<compile_context>
chip_gen: v6e
topology: v6e:2x2x1
jax: 0.10.0
libtpu: 0.0.40
codegen_flags: <defaults>
</compile_context>

<pallas_src>
import functools

import jax
import jax.numpy as jnp
from jax.experimental import pallas as pl
from jax.experimental.pallas import tpu as pltpu


def _kd_loss_kernel(t_ref, s_ref, w_ref, b_ref, o_ref, acc_ref, *,
                    wc, row_tile, inv_total, need_mask):
    c = pl.program_id(0)           # TensorCore shard (parallel axis)
    j = pl.program_id(1)           # row-tile within this shard (reduction axis)
    nj = pl.num_programs(1)

    @pl.when(j == 0)
    def _():
        acc_ref[...] = jnp.zeros_like(acc_ref)

    # Linear: proj = student @ W^T + b (W passed pre-transposed as [Sd, Td]).
    # Operands go to the MXU in their stored dtype (bf16-friendly); acc is f32.
    proj = jnp.dot(s_ref[...], w_ref[...], preferred_element_type=jnp.float32)
    proj = proj + b_ref[...].astype(jnp.float32)

    # teacher is detached in PyTorch -> forward value only.
    diff = proj - t_ref[...].astype(jnp.float32)

    if need_mask:
        base = (c * nj + j) * row_tile
        row_ids = jax.lax.broadcasted_iota(jnp.int32, diff.shape, 0) + base
        diff = jnp.where(row_ids < wc, diff, jnp.float32(0.0))

    # Pure VPU accumulation; no cross-lane reduce per step.
    acc_ref[...] += diff * diff

    @pl.when(j == nj - 1)
    def _():
        partial = jnp.sum(acc_ref[...]) * jnp.float32(inv_total)
        # Lane-dense per-core partial (wrapper sums lane 0 of each core row).
        o_ref[...] = partial * jnp.ones((1, 1, 128), jnp.float32)


def embedding_layer_loss(teacher_embd, student_embd, weight, bias, *,
                         row_tile=256, num_cores=2):
    """MSE(proj(student), teacher), mean over all elements. Returns f32 scalar.

    teacher_embd: [W, Td]   student_embd: [W, Sd]
    weight: [Td, Sd] (nn.Linear layout)   bias: [Td]
    """
    wc, td = teacher_embd.shape
    _, sd = student_embd.shape
    assert weight.shape == (td, sd)
    assert bias.shape == (td,)

    # Pad rows so the grid is (num_cores, tiles_per_core); padded rows are
    # masked in-kernel (zero-padding alone would be wrong because of the bias).
    chunk = num_cores * row_tile
    wc_pad = ((wc + chunk - 1) // chunk) * chunk
    need_mask = wc_pad != wc
    if need_mask:
        teacher_embd = jnp.pad(teacher_embd, ((0, wc_pad - wc), (0, 0)))
        student_embd = jnp.pad(student_embd, ((0, wc_pad - wc), (0, 0)))
    tiles_per_core = wc_pad // chunk

    w_t = weight.T                       # [Sd, Td]
    b2 = bias.reshape(1, td)             # [1, Td]
    inv_total = 1.0 / float(wc * td)     # true element count

    kernel = functools.partial(
        _kd_loss_kernel,
        wc=wc, row_tile=row_tile, inv_total=inv_total, need_mask=need_mask,
    )

    out = pl.pallas_call(
        kernel,
        out_shape=jax.ShapeDtypeStruct((num_cores, 1, 128), jnp.float32),
        grid_spec=pltpu.PrefetchScalarGridSpec(
            num_scalar_prefetch=0,
            grid=(num_cores, tiles_per_core),
            in_specs=[
                # teacher tile [row_tile, Td]
                pl.BlockSpec((row_tile, td),
                             lambda c, j: (c * tiles_per_core + j, 0)),
                # student tile [row_tile, Sd]
                pl.BlockSpec((row_tile, sd),
                             lambda c, j: (c * tiles_per_core + j, 0)),
                # W^T resident in VMEM
                pl.BlockSpec((sd, td), lambda c, j: (0, 0)),
                # bias resident in VMEM
                pl.BlockSpec((1, td), lambda c, j: (0, 0)),
            ],
            # one lane-dense partial per core
            out_specs=pl.BlockSpec((1, 1, 128), lambda c, j: (c, 0, 0)),
            # lane-resident f32 accumulator (per-core VMEM scratch)
            scratch_shapes=[pltpu.VMEM((row_tile, td), jnp.float32)],
        ),
        compiler_params=pltpu.CompilerParams(
            dimension_semantics=("parallel", "arbitrary"),
        ),
    )(teacher_embd, student_embd, w_t, b2)

    # Sum the per-core partials (each already scaled by 1/(wc*td)).
    return jnp.sum(out[:, 0, 0])


if __name__ == "__main__":
    key = jax.random.PRNGKey(0)
    k_t, k_s, k_w, k_b = jax.random.split(key, 4)

    word_count = 300        # not a multiple of the tile -> exercises masking
    teacher_dim = 48
    student_dim = 32

    teacher = jax.random.normal(k_t, (word_count, teacher_dim), dtype=jnp.float32)
    student = jax.random.normal(k_s, (word_count, student_dim), dtype=jnp.float32)

    # Deterministic nn.Linear-style init: U(-1/sqrt(in), 1/sqrt(in))
    bound = 1.0 / (student_dim ** 0.5)
    weight = jax.random.uniform(
        k_w, (teacher_dim, student_dim), minval=-bound, maxval=bound,
        dtype=jnp.float32)
    bias = jax.random.uniform(
        k_b, (teacher_dim,), minval=-bound, maxval=bound, dtype=jnp.float32)

    loss = embedding_layer_loss(teacher, student, weight, bias)
    jax.block_until_ready(loss)

    # Pure-JAX reference check
    ref = jnp.mean((student @ weight.T + bias - teacher) ** 2)
    assert jnp.allclose(loss, ref, rtol=1e-5, atol=1e-6), (loss, ref)

    print("KERNEL_OK")
</pallas_src>

<mosaic_0001>
module attributes {stable_mosaic.version = 11 : i64} {
  func.func @_kd_loss_kernel(%arg0: i32, %arg1: i32, %arg2: memref<256x48xf32, #tpu.memory_space<vmem>>, %arg3: memref<256x32xf32, #tpu.memory_space<vmem>>, %arg4: memref<32x48xf32, #tpu.memory_space<vmem>>, %arg5: memref<1x48xf32, #tpu.memory_space<vmem>>, %arg6: memref<1x1x128xf32, #tpu.memory_space<vmem>>, %arg7: memref<256x48xf32, #tpu.memory_space<vmem>>) attributes {dimension_semantics = [#tpu.dimension_semantics<parallel>, #tpu.dimension_semantics<arbitrary>], iteration_bounds = array<i64: 2, 1>, scalar_prefetch = 0 : i64, scratch_operands = 1 : i64, tpu.core_type = #tpu.core_type<tc>, window_params = [{transform_indices = @transform_0, window_bounds = array<i64: 256, 48>}, {transform_indices = @transform_1, window_bounds = array<i64: 256, 32>}, {pipeline_mode = #tpu.pipeline_mode<synchronous>, transform_indices = @transform_2, window_bounds = array<i64: 32, 48>}, {pipeline_mode = #tpu.pipeline_mode<synchronous>, transform_indices = @transform_3, window_bounds = array<i64: 1, 48>}, {transform_indices = @transform_4, window_bounds = array<i64: 1, 1, 128>}]} {
    %c0_i32 = arith.constant 0 : i32
    %0 = arith.cmpi eq, %arg1, %c0_i32 : i32
    %1 = arith.extui %0 : i1 to i32
    %c0_i32_0 = arith.constant 0 : i32
    %2 = arith.cmpi ne, %1, %c0_i32_0 : i32
    scf.if %2 {
      %cst_15 = arith.constant 0.000000e+00 : f32
      %28 = vector.broadcast %cst_15 : f32 to vector<256x48xf32>
      %c0_16 = arith.constant 0 : index
      %c0_17 = arith.constant 0 : index
      %29 = vector.load %arg7[%c0_16, %c0_17] : memref<256x48xf32, #tpu.memory_space<vmem>>, vector<256x48xf32>
      tpu.vector_store %arg7[%c0_16, %c0_17], %28 {strides = array<i32>} : memref<256x48xf32, #tpu.memory_space<vmem>>, vector<256x48xf32>,
    } else {
    }
    %c0 = arith.constant 0 : index
    %c0_1 = arith.constant 0 : index
    %3 = vector.load %arg3[%c0, %c0_1] : memref<256x32xf32, #tpu.memory_space<vmem>>, vector<256x32xf32>
    %c0_2 = arith.constant 0 : index
    %c0_3 = arith.constant 0 : index
    %4 = vector.load %arg4[%c0_2, %c0_3] : memref<32x48xf32, #tpu.memory_space<vmem>>, vector<32x48xf32>
    %cst = arith.constant dense<0.000000e+00> : vector<256x48xf32>
    %5 = tpu.matmul %3, %4, %cst {dimension_numbers = #tpu.dot_dimension_numbers<[1], [0], [0], [1], [0, 0, 1, 1], [], []>} : vector<256x32xf32>, vector<32x48xf32>, vector<256x48xf32> -> vector<256x48xf32>
    %c0_4 = arith.constant 0 : index
    %c0_5 = arith.constant 0 : index
    %6 = vector.load %arg5[%c0_4, %c0_5] : memref<1x48xf32, #tpu.memory_space<vmem>>, vector<1x48xf32>
    %7 = vector.broadcast %6 : vector<1x48xf32> to vector<256x48xf32>
    %8 = arith.addf %5, %7 : vector<256x48xf32>
    %c0_6 = arith.constant 0 : index
    %c0_7 = arith.constant 0 : index
    %9 = vector.load %arg2[%c0_6, %c0_7] : memref<256x48xf32, #tpu.memory_space<vmem>>, vector<256x48xf32>
    %10 = arith.subf %8, %9 : vector<256x48xf32>
    %c1_i32 = arith.constant 1 : i32
    %11 = arith.muli %arg0, %c1_i32 : i32
    %12 = arith.addi %11, %arg1 : i32
    %c256_i32 = arith.constant 256 : i32
    %13 = arith.muli %12, %c256_i32 : i32
    %14 = tpu.iota {dimensions = array<i32: 0>} : vector<256x48xi32>
    %15 = vector.broadcast %13 : i32 to vector<256x48xi32>
    %16 = arith.addi %14, %15 : vector<256x48xi32>
    %c300_i32 = arith.constant 300 : i32
    %17 = vector.broadcast %c300_i32 : i32 to vector<256x48xi32>
    %18 = arith.cmpi slt, %16, %17 : vector<256x48xi32>
    %cst_8 = arith.constant 0.000000e+00 : f32
    %19 = vector.broadcast %cst_8 : f32 to vector<256x48xf32>
    %20 = arith.select %18, %10, %19 : vector<256x48xi1>, vector<256x48xf32>
    %c0_9 = arith.constant 0 : index
    %c0_10 = arith.constant 0 : index
    %21 = vector.load %arg7[%c0_9, %c0_10] : memref<256x48xf32, #tpu.memory_space<vmem>>, vector<256x48xf32>
    %22 = arith.mulf %20, %20 : vector<256x48xf32>
    %23 = arith.addf %21, %22 : vector<256x48xf32>
    %c0_11 = arith.constant 0 : index
    %c0_12 = arith.constant 0 : index
    %24 = vector.load %arg7[%c0_11, %c0_12] : memref<256x48xf32, #tpu.memory_space<vmem>>, vector<256x48xf32>
    tpu.vector_store %arg7[%c0_11, %c0_12], %23 {strides = array<i32>} : memref<256x48xf32, #tpu.memory_space<vmem>>, vector<256x48xf32>,
    %c0_i32_13 = arith.constant 0 : i32
    %25 = arith.cmpi eq, %arg1, %c0_i32_13 : i32
    %26 = arith.extui %25 : i1 to i32
    %c0_i32_14 = arith.constant 0 : i32
    %27 = arith.cmpi ne, %26, %c0_i32_14 : i32
    scf.if %27 {
      %c0_15 = arith.constant 0 : index
      %c0_16 = arith.constant 0 : index
      %28 = vector.load %arg7[%c0_15, %c0_16] : memref<256x48xf32, #tpu.memory_space<vmem>>, vector<256x48xf32>
      %29 = vector.shape_cast %28 : vector<256x48xf32> to vector<1x256x48xf32>
      %cst_17 = arith.constant dense<0.000000e+00> : vector<1xf32>
      %30 = vector.multi_reduction <add>, %29, %cst_17 [1, 2] : vector<1x256x48xf32> to vector<1xf32>
      %31 = vector.shape_cast %30 : vector<1xf32> to vector<1x1x1xf32>
      %32 = vector.extract %31[0, 0, 0] : f32 from vector<1x1x1xf32>
      %cst_18 = arith.constant 6.94444461E-5 : f32
      %33 = arith.mulf %32, %cst_18 : f32
      %cst_19 = arith.constant 1.000000e+00 : f32
      %34 = vector.broadcast %cst_19 : f32 to vector<1x1x128xf32>
      %35 = vector.broadcast %33 : f32 to vector<1x1x128xf32>
      %36 = arith.mulf %35, %34 : vector<1x1x128xf32>
      %c0_20 = arith.constant 0 : index
      %c0_21 = arith.constant 0 : index
      %c0_22 = arith.constant 0 : index
      %37 = vector.load %arg6[%c0_20, %c0_21, %c0_22] : memref<1x1x128xf32, #tpu.memory_space<vmem>>, vector<1x1x128xf32>
      tpu.vector_store %arg6[%c0_20, %c0_21, %c0_22], %36 {strides = array<i32>} : memref<1x1x128xf32, #tpu.memory_space<vmem>>, vector<1x1x128xf32>,
    } else {
    }
    return
  }
  func.func @transform_0(%arg0: i32, %arg1: i32) -> (i32, i32) {
    %c1_i32 = arith.constant 1 : i32
    %0 = arith.muli %arg0, %c1_i32 : i32
    %1 = arith.addi %0, %arg1 : i32
    %c0_i32 = arith.constant 0 : i32
    %c0_i32_0 = arith.constant 0 : i32
    return %1, %c0_i32 : i32, i32
  }
  func.func @transform_1(%arg0: i32, %arg1: i32) -> (i32, i32) {
    %c1_i32 = arith.constant 1 : i32
    %0 = arith.muli %arg0, %c1_i32 : i32
    %1 = arith.addi %0, %arg1 : i32
    %c0_i32 = arith.constant 0 : i32
    %c0_i32_0 = arith.constant 0 : i32
    return %1, %c0_i32 : i32, i32
  }
  func.func @transform_2(%arg0: i32, %arg1: i32) -> (i32, i32) {
    %c0_i32 = arith.constant 0 : i32
    %c0_i32_0 = arith.constant 0 : i32
    %c0_i32_1 = arith.constant 0 : i32
    return %c0_i32, %c0_i32_0 : i32, i32
  }
  func.func @transform_3(%arg0: i32, %arg1: i32) -> (i32, i32) {
    %c0_i32 = arith.constant 0 : i32
    %c0_i32_0 = arith.constant 0 : i32
    %c0_i32_1 = arith.constant 0 : i32
    return %c0_i32, %c0_i32_0 : i32, i32
  }
  func.func @transform_4(%arg0: i32, %arg1: i32) -> (i32, i32, i32) {
    %c0_i32 = arith.constant 0 : i32
    %c0_i32_0 = arith.constant 0 : i32
    %c0_i32_1 = arith.constant 0 : i32
    return %arg0, %c0_i32, %c0_i32_0 : i32, i32, i32
  }
}

</mosaic_0001>

<llo_original>
// kernel: tpu_custom_call.1
$region0: #{tpu_custom_call.1}
  #allocation0 [shape = 'u32[]', space=smem, size = 0x4, offset = 0x4, fixed_abs, tag = 'smem constant byte address 0x4 - core index']
  #allocation1 [shape = 'u32[144,128]{1,0:T(1,128)}', space=vmem, size = 0x12000, scoped, tag = 'internal scratch']
  #allocation2 [shape = 'f32[256,48]{1,0:T(8,128)}', space=vmem, size = 0x20000, scoped, tag = 'scratch operand']
  %s0 = inlined_call_operand.vmem [shape: f32[512,48], index: 0, kind: input, shape index: {}]
  %s1 = inlined_call_operand.vmem [shape: f32[512,32], index: 1, kind: input, shape index: {}]
  %s2 = inlined_call_operand.vmem [shape: f32[32,48], index: 2, kind: input, shape index: {}]
  %s3 = inlined_call_operand.vmem [shape: f32[1,48], index: 3, kind: input, shape index: {}]
  %s4 = inlined_call_operand.hbm [shape: f32[2,1,128], index: 4, kind: output, shape index: {}]
  %s5 = sld [smem:[#allocation0]]
  $region57: #{tpu_custom_call.1} parent=0
    _
  %s7 = ssub.s32 1, %s5
  %s8 = scalar_select 0, %s7, %s5
  $region1: #{tpu_custom_call.1} parent=0
    #allocation3 [shape = 'u8[1024]{0}', space=vmem, size = 0x400, scoped, tag = 'output window, operand 0']
    #allocation4 [shape = 's32[2]{0}', space=sflag, size = 0x8, scoped, tag = 'scoped memory for tpu_custom_call.1']
    %9 = vsyncpa [#allocation4], 0
    %s10 = scalar_lea.sflag [#allocation4], 1
    %11 = vsyncpa %s10, 0
    loop: start=0, step=1, limit=4
    $region2: #{tpu_custom_call.1} parent=1 // loop_pre_header
      _
    $region3: #{tpu_custom_call.1} parent=1 // loop_header
      %s13 = sphi 0, %s17
      %p14 = scmp.ge.s32.totalorder %s13, 4
      %s20 = sphi 0, %s32
      %s21 = sphi 0, %s28
      %s22 = sphi 0, %s20
      %s23 = sphi 0, %s21
      %s24 = sphi 0, %s22
      %s25 = sphi 0, %s23
      %s37 = sphi 0, %s39
      %s40 = sphi 0, %s37
      %s41 = sphi 0, %s40
      %s57 = sphi 0, %s41
      %s65 = sphi 0, %s67
      %s68 = sphi 0, %s65
      %s69 = sphi 0, %s68
      %s85 = sphi 0, %s69
      %s89 = sphi 0, %s89
      %s91 = sphi 0, %s89
      %s92 = sphi 0, %s91
      %s106 = sphi 0, %s92
      %s110 = sphi 0, %s110
      %s112 = sphi 0, %s110
      %s113 = sphi 0, %s112
      %s127 = sphi 0, %s113
      %s133 = sphi 0, %s135
      %s136 = sphi 0, %s133
      %s137 = sphi 0, %s136
      %s153 = sphi 0, %s137
    $region4: #{tpu_custom_call.1} parent=1 // loop_header_branch
      %16 = sbr.rel (%p14) target = $region8
    $region5: #{tpu_custom_call.1} parent=1 // loop_body
      %s18 = ssub.s32 %s13, 1
      %s19 = ssub.s32 %s13, 2
      %s26 = sadd.s32 1, %s21
      %p27 = scmp.ge.s32.totalorder %s26, 1
      %s28 = scalar_select %p27, 0, %s26
      %s29 = sadd.s32 1, %s20
      %s30 = scalar_select %p27, %s29, %s20
      %p31 = scmp.ge.s32.totalorder %s30, 2
      %s32 = scalar_select %p31, 0, %s30
      %s33 = sadd.s32 %s20, %s21
      %s34 = sadd.s32 %s32, %s28
      %s35 = ssub.s32 %s33, %s34
      %p36 = scmp.eq.s32.totalorder %s35, 0
      %s38 = sadd.s32 %s37, 1
      %s39 = scalar_select %p36, %s37, %s38
      %p42 = pneg %p36
      %p43 = scmp.eq.s32.totalorder %s13, 1
      %p44 = por %p42, %p43
      %p45 = scmp.ne.s32.totalorder %s37, %s40
      %p46 = scmp.eq.s32.totalorder %s13, 0
      %p47 = por %p45, %p46
      %p48 = scmp.ne.s32.totalorder %s37, %s40
      %p49 = scmp.eq.s32.totalorder %s18, 1
      %p50 = por %p48, %p49
      %p51 = scmp.ne.s32.totalorder %s40, %s41
      %p52 = scmp.eq.s32.totalorder %s18, 0
      %p53 = por %p51, %p52
      %p54 = scmp.ne.s32.totalorder %s40, %s41
      %p55 = scmp.eq.s32.totalorder %s19, 1
      %p56 = por %p54, %p55
      %p58 = scmp.ne.s32.totalorder %s41, %s57
      %p59 = scmp.eq.s32.totalorder %s19, 0
      %p60 = por %p58, %p59
      %s61 = sadd.s32 %s20, %s21
      %s62 = sadd.s32 %s32, %s28
      %s63 = ssub.s32 %s61, %s62
      %p64 = scmp.eq.s32.totalorder %s63, 0
      %s66 = sadd.s32 %s65, 1
      %s67 = scalar_select %p64, %s65, %s66
      %p70 = pneg %p64
      %p71 = scmp.eq.s32.totalorder %s13, 1
      %p72 = por %p70, %p71
      %p73 = scmp.ne.s32.totalorder %s65, %s68
      %p74 = scmp.eq.s32.totalorder %s13, 0
      %p75 = por %p73, %p74
      %p76 = scmp.ne.s32.totalorder %s65, %s68
      %p77 = scmp.eq.s32.totalorder %s18, 1
      %p78 = por %p76, %p77
      %p79 = scmp.ne.s32.totalorder %s68, %s69
      %p80 = scmp.eq.s32.totalorder %s18, 0
      %p81 = por %p79, %p80
      %p82 = scmp.ne.s32.totalorder %s68, %s69
      %p83 = scmp.eq.s32.totalorder %s19, 1
      %p84 = por %p82, %p83
      %p86 = scmp.ne.s32.totalorder %s69, %s85
      %p87 = scmp.eq.s32.totalorder %s19, 0
      %p88 = por %p86, %p87
      %s90 = sadd.s32 %s89, 1
      %p93 = scmp.eq.s32.totalorder %s13, 1
      %p94 = scmp.ne.s32.totalorder %s89, %s91
      %p95 = scmp.eq.s32.totalorder %s13, 0
      %p96 = por %p94, %p95
      %p97 = scmp.ne.s32.totalorder %s89, %s91
      %p98 = scmp.eq.s32.totalorder %s18, 1
      %p99 = por %p97, %p98
      %p100 = scmp.ne.s32.totalorder %s91, %s92
      %p101 = scmp.eq.s32.totalorder %s18, 0
      %p102 = por %p100, %p101
      %p103 = scmp.ne.s32.totalorder %s91, %s92
      %p104 = scmp.eq.s32.totalorder %s19, 1
      %p105 = por %p103, %p104
      %p107 = scmp.ne.s32.totalorder %s92, %s106
      %p108 = scmp.eq.s32.totalorder %s19, 0
      %p109 = por %p107, %p108
      %s111 = sadd.s32 %s110, 1
      %p114 = scmp.eq.s32.totalorder %s13, 1
      %p115 = scmp.ne.s32.totalorder %s110, %s112
      %p116 = scmp.eq.s32.totalorder %s13, 0
      %p117 = por %p115, %p116
      %p118 = scmp.ne.s32.totalorder %s110, %s112
      %p119 = scmp.eq.s32.totalorder %s18, 1
      %p120 = por %p118, %p119
      %p121 = scmp.ne.s32.totalorder %s112, %s113
      %p122 = scmp.eq.s32.totalorder %s18, 0
      %p123 = por %p121, %p122
      %p124 = scmp.ne.s32.totalorder %s112, %s113
      %p125 = scmp.eq.s32.totalorder %s19, 1
      %p126 = por %p124, %p125
      %p128 = scmp.ne.s32.totalorder %s113, %s127
      %p129 = scmp.eq.s32.totalorder %s19, 0
      %p130 = por %p128, %p129
      %s131 = ssub.s32 %s20, %s32
      %p132 = scmp.eq.s32.totalorder %s131, 0
      %s134 = sadd.s32 %s133, 1
      %s135 = scalar_select %p132, %s133, %s134
      %p138 = pneg %p132
      %p139 = scmp.eq.s32.totalorder %s13, 1
      %p140 = por %p138, %p139
      %p141 = scmp.ne.s32.totalorder %s133, %s136
      %p142 = scmp.eq.s32.totalorder %s13, 0
      %p143 = por %p141, %p142
      %p144 = scmp.ne.s32.totalorder %s133, %s136
      %p145 = scmp.eq.s32.totalorder %s18, 1
      %p146 = por %p144, %p145
      %p147 = scmp.ne.s32.totalorder %s136, %s137
      %p148 = scmp.eq.s32.totalorder %s18, 0
      %p149 = por %p147, %p148
      %p150 = scmp.ne.s32.totalorder %s136, %s137
      %p151 = scmp.eq.s32.totalorder %s19, 1
      %p152 = por %p150, %p151
      %p154 = scmp.ne.s32.totalorder %s137, %s153
      %p155 = scmp.eq.s32.totalorder %s19, 0
      %p156 = por %p154, %p155
      %p157 = scmp.le.s32.totalorder 1, %s13
      %p158 = scmp.lt.s32.totalorder %s13, 3
      %p159 = pnand %p157, %p158
      %p160 = pneg %p159
      // Predicated region
      $region9: #{tpu_custom_call.1} parent=5 // pred_check
        _
      $region10: #{tpu_custom_call.1} parent=5 // pred_check_branch
        %162 = sbr.rel (%p159) target = $region12
      $region11: #{tpu_custom_call.1} parent=5 // pred_region
        %s163 = ssub.s32 %s13, 1
        // Predicated region
        $region13: #{tpu_custom_call.1} parent=11 // pred_check
          %p164 = pneg %p102
        $region14: #{tpu_custom_call.1} parent=11 // pred_check_branch
          %166 = sbr.rel (%p164) target = $region16
        $region15: #{tpu_custom_call.1} parent=11 // pred_region
          _
        $region16: #{tpu_custom_call.1} parent=11 // pred_fallthru
          _
        // Predicated region
        $region17: #{tpu_custom_call.1} parent=11 // pred_check
          %p167 = pneg %p123
        $region18: #{tpu_custom_call.1} parent=11 // pred_check_branch
          %169 = sbr.rel (%p167) target = $region20
        $region19: #{tpu_custom_call.1} parent=11 // pred_region
          _
        $region20: #{tpu_custom_call.1} parent=11 // pred_fallthru
          _
      $region12: #{tpu_custom_call.1} parent=5 // pred_fallthru
        _
      %p170 = scmp.lt.s32.totalorder %s13, 2
      // Predicated region
      $region21: #{tpu_custom_call.1} parent=5 // pred_check
        %p171 = pneg %p170
      $region22: #{tpu_custom_call.1} parent=5 // pred_check_branch
        %173 = sbr.rel (%p171) target = $region24
      $region23: #{tpu_custom_call.1} parent=5 // pred_region
        // Predicated region
        $region25: #{tpu_custom_call.1} parent=23 // pred_check
          %p174 = pneg %p47
        $region26: #{tpu_custom_call.1} parent=23 // pred_check_branch
          %176 = sbr.rel (%p174) target = $region28
        $region27: #{tpu_custom_call.1} parent=23 // pred_region
          %s177 = sadd.s32 %s20, %s21
          %s178 = smul.u32 32, %s177
          %p179 = scmp.lt.s32.totalorder %s178, 63
          %s180 = scalar_select %p179, %s178, 63
          %s181 = smul.addr %s180, 8
          %s182 = scalar_lea.vmem %s0, %s181
          %s183 = sadd.s32 %s20, %s21
          %s184 = smul.u32 32, %s183
        $region28: #{tpu_custom_call.1} parent=23 // pred_fallthru
          _
        // Predicated region
        $region29: #{tpu_custom_call.1} parent=23 // pred_check
          %p185 = pneg %p75
        $region30: #{tpu_custom_call.1} parent=23 // pred_check_branch
          %187 = sbr.rel (%p185) target = $region32
        $region31: #{tpu_custom_call.1} parent=23 // pred_region
          %s188 = sadd.s32 %s20, %s21
          %s189 = smul.u32 32, %s188
          %p190 = scmp.lt.s32.totalorder %s189, 63
          %s191 = scalar_select %p190, %s189, 63
          %s192 = smul.addr %s191, 8
          %s193 = scalar_lea.vmem %s1, %s192
          %s194 = sadd.s32 %s20, %s21
          %s195 = smul.u32 32, %s194
        $region32: #{tpu_custom_call.1} parent=23 // pred_fallthru
          _
      $region24: #{tpu_custom_call.1} parent=5 // pred_fallthru
        _
      %p196 = scmp.le.s32.totalorder 1, %s13
      %p197 = scmp.lt.s32.totalorder %s13, 3
      %p198 = pnand %p196, %p197
      %p199 = pneg %p198
      // Predicated region
      $region33: #{tpu_custom_call.1} parent=5 // pred_check
        _
      $region34: #{tpu_custom_call.1} parent=5 // pred_check_branch
        %201 = sbr.rel (%p198) target = $region36
      $region35: #{tpu_custom_call.1} parent=5 // pred_region
        %s202 = ssub.s32 %s13, 1
        %s203 = sadd.s32 %s22, %s23
        %s204 = smul.u32 32, %s203
        %p205 = scmp.lt.s32.totalorder %s204, 63
        %s206 = scalar_select %p205, %s204, 63
        %s207 = smul.addr %s206, 8
        %s208 = scalar_lea.vmem %s0, %s207
        %p209 = pneg %p53
        %p210 = pneg %p50
        %s211 = sadd.s32 %s22, %s23
        %s212 = smul.u32 32, %s211
        %p213 = scmp.lt.s32.totalorder %s212, 63
        %s214 = scalar_select %p213, %s212, 63
        %s215 = smul.addr %s214, 8
        %s216 = scalar_lea.vmem %s1, %s215
        %p217 = pneg %p81
        %p218 = pneg %p78
        %p219 = pneg %p102
        %p220 = pneg %p99
        %p221 = pneg %p123
        %p222 = pneg %p120
        %p223 = pneg %p149
        %p224 = pneg %p146
        %s225 = sand.u32 %s136, 1
        %s226 = scalar_lea.sflag [#allocation4], %s225
        %s227 = sand.u32 %s136, 1
        %s228 = scalar_lea.vmem [#allocation3], %s227
        %s229 = sadd.s32 %s22, %s23
        %s230 = smul.u32 32, %s229
        %p231 = scmp.lt.s32.totalorder %s230, 63
        %s232 = scalar_select %p231, %s230, 63
        %s233 = smul.addr %s232, 8
        %s234 = scalar_lea.vmem %s0, %s233
        %s235 = sadd.s32 %s22, %s23
        %s236 = smul.u32 32, %s235
        %s237 = sadd.s32 %s22, %s23
        %s238 = smul.u32 32, %s237
        %p239 = scmp.lt.s32.totalorder %s238, 63
        %s240 = scalar_select %p239, %s238, 63
        %s241 = smul.addr %s240, 8
        %s242 = scalar_lea.vmem %s1, %s241
        %s243 = sadd.s32 %s22, %s23
        %s244 = smul.u32 32, %s243
        %p245 = scmp.eq.s32.totalorder %s23, 0
        // Predicated region
        $region37: #{tpu_custom_call.1} parent=35 // pred_check
          %p246 = pneg %p245
        $region38: #{tpu_custom_call.1} parent=35 // pred_check_branch
          %248 = sbr.rel (%p246) target = $region40
        $region39: #{tpu_custom_call.1} parent=35 // pred_region
          %vm249 = vcmask 392192
          %250 = vst.msk [vmem:[#allocation2] sm:$0xff] %vm249, 0.0
          %251 = vst.msk [vmem:[#allocation2 + $0x8] sm:$0xff] %vm249, 0.0
          %252 = vst.msk [vmem:[#allocation2 + $0x10] sm:$0xff] %vm249, 0.0
          %253 = vst.msk [vmem:[#allocation2 + $0x18] sm:$0xff] %vm249, 0.0
          %254 = vst.msk [vmem:[#allocation2 + $0x20] sm:$0xff] %vm249, 0.0
          %255 = vst.msk [vmem:[#allocation2 + $0x28] sm:$0xff] %vm249, 0.0
          %256 = vst.msk [vmem:[#allocation2 + $0x30] sm:$0xff] %vm249, 0.0
          %257 = vst.msk [vmem:[#allocation2 + $0x38] sm:$0xff] %vm249, 0.0
          %258 = vst.msk [vmem:[#allocation2 + $0x40] sm:$0xff] %vm249, 0.0
          %259 = vst.msk [vmem:[#allocation2 + $0x48] sm:$0xff] %vm249, 0.0
          %260 = vst.msk [vmem:[#allocation2 + $0x50] sm:$0xff] %vm249, 0.0
          %261 = vst.msk [vmem:[#allocation2 + $0x58] sm:$0xff] %vm249, 0.0
          %262 = vst.msk [vmem:[#allocation2 + $0x60] sm:$0xff] %vm249, 0.0
          %263 = vst.msk [vmem:[#allocation2 + $0x68] sm:$0xff] %vm249, 0.0
          %264 = vst.msk [vmem:[#allocation2 + $0x70] sm:$0xff] %vm249, 0.0
          %265 = vst.msk [vmem:[#allocation2 + $0x78] sm:$0xff] %vm249, 0.0
          %266 = vst.msk [vmem:[#allocation2 + $0x80] sm:$0xff] %vm249, 0.0
          %267 = vst.msk [vmem:[#allocation2 + $0x88] sm:$0xff] %vm249, 0.0
          %268 = vst.msk [vmem:[#allocation2 + $0x90] sm:$0xff] %vm249, 0.0
          %269 = vst.msk [vmem:[#allocation2 + $0x98] sm:$0xff] %vm249, 0.0
          %270 = vst.msk [vmem:[#allocation2 + $0xa0] sm:$0xff] %vm249, 0.0
          %271 = vst.msk [vmem:[#allocation2 + $0xa8] sm:$0xff] %vm249, 0.0
          %272 = vst.msk [vmem:[#allocation2 + $0xb0] sm:$0xff] %vm249, 0.0
          %273 = vst.msk [vmem:[#allocation2 + $0xb8] sm:$0xff] %vm249, 0.0
          %274 = vst.msk [vmem:[#allocation2 + $0xc0] sm:$0xff] %vm249, 0.0
          %275 = vst.msk [vmem:[#allocation2 + $0xc8] sm:$0xff] %vm249, 0.0
          %276 = vst.msk [vmem:[#allocation2 + $0xd0] sm:$0xff] %vm249, 0.0
          %277 = vst.msk [vmem:[#allocation2 + $0xd8] sm:$0xff] %vm249, 0.0
          %278 = vst.msk [vmem:[#allocation2 + $0xe0] sm:$0xff] %vm249, 0.0
          %279 = vst.msk [vmem:[#allocation2 + $0xe8] sm:$0xff] %vm249, 0.0
          %280 = vst.msk [vmem:[#allocation2 + $0xf0] sm:$0xff] %vm249, 0.0
          %281 = vst.msk [vmem:[#allocation2 + $0xf8] sm:$0xff] %vm249, 0.0
        $region40: #{tpu_custom_call.1} parent=35 // pred_fallthru
          _
        %v282 = vld [vmem:[%s242] sm:$0xff]
        %v283 = vld [vmem:[%s242 + $0x8] sm:$0xff]
        %v284 = vld [vmem:[%s242 + $0x10] sm:$0xff]
        %v285 = vld [vmem:[%s242 + $0x18] sm:$0xff]
        %v286 = vld [vmem:[%s242 + $0x20] sm:$0xff]
        %v287 = vld [vmem:[%s242 + $0x28] sm:$0xff]
        %v288 = vld [vmem:[%s242 + $0x30] sm:$0xff]
        %v289 = vld [vmem:[%s242 + $0x38] sm:$0xff]
        %v290 = vld [vmem:[%s242 + $0x40] sm:$0xff]
        %v291 = vld [vmem:[%s242 + $0x48] sm:$0xff]
        %v292 = vld [vmem:[%s242 + $0x50] sm:$0xff]
        %v293 = vld [vmem:[%s242 + $0x58] sm:$0xff]
        %v294 = vld [vmem:[%s242 + $0x60] sm:$0xff]
        %v295 = vld [vmem:[%s242 + $0x68] sm:$0xff]
        %v296 = vld [vmem:[%s242 + $0x70] sm:$0xff]
        %v297 = vld [vmem:[%s242 + $0x78] sm:$0xff]
        %v298 = vld [vmem:[%s242 + $0x80] sm:$0xff]
        %v299 = vld [vmem:[%s242 + $0x88] sm:$0xff]
        %v300 = vld [vmem:[%s242 + $0x90] sm:$0xff]
        %v301 = vld [vmem:[%s242 + $0x98] sm:$0xff]
        %v302 = vld [vmem:[%s242 + $0xa0] sm:$0xff]
        %v303 = vld [vmem:[%s242 + $0xa8] sm:$0xff]
        %v304 = vld [vmem:[%s242 + $0xb0] sm:$0xff]
        %v305 = vld [vmem:[%s242 + $0xb8] sm:$0xff]
        %v306 = vld [vmem:[%s242 + $0xc0] sm:$0xff]
        %v307 = vld [vmem:[%s242 + $0xc8] sm:$0xff]
        %v308 = vld [vmem:[%s242 + $0xd0] sm:$0xff]
        %v309 = vld [vmem:[%s242 + $0xd8] sm:$0xff]
        %v310 = vld [vmem:[%s242 + $0xe0] sm:$0xff]
        %v311 = vld [vmem:[%s242 + $0xe8] sm:$0xff]
        %v312 = vld [vmem:[%s242 + $0xf0] sm:$0xff]
        %v313 = vld [vmem:[%s242 + $0xf8] sm:$0xff]
        %v314 = vld [vmem:[%s2] sm:$0xff]
        %v315 = vld [vmem:[%s2 + $0x8] sm:$0xff]
        %v316 = vld [vmem:[%s2 + $0x10] sm:$0xff]
        %v317 = vld [vmem:[%s2 + $0x18] sm:$0xff]
        %v318 = vld [vmem:[%s3] sm:$0x1]
        %v320 = vlaneseq
        %v321 = vshrl.u32 %v320, 7
        %v322 = vsub.s32 0, %v321
        %v323 = vrot.slane %v318, %v322
        %vm325 = vcmask 261120
        %v327 = vsel %vm325, %v282, 0
        %v330 = vsel %vm325, %v283, 0
        %v333 = vsel %vm325, %v284, 0
        %v336 = vsel %vm325, %v285, 0
        %v339 = vsel %vm325, %v286, 0
        %v342 = vsel %vm325, %v287, 0
        %v345 = vsel %vm325, %v288, 0
        %v348 = vsel %vm325, %v289, 0
        %v351 = vsel %vm325, %v290, 0
        %v354 = vsel %vm325, %v291, 0
        %v357 = vsel %vm325, %v292, 0
        %v360 = vsel %vm325, %v293, 0
        %v363 = vsel %vm325, %v294, 0
        %v366 = vsel %vm325, %v295, 0
        %v369 = vsel %vm325, %v296, 0
        %v372 = vsel %vm325, %v297, 0
        %v375 = vsel %vm325, %v298, 0
        %v378 = vsel %vm325, %v299, 0
        %v381 = vsel %vm325, %v300, 0
        %v384 = vsel %vm325, %v301, 0
        %v387 = vsel %vm325, %v302, 0
        %v390 = vsel %vm325, %v303, 0
        %v393 = vsel %vm325, %v304, 0
        %v396 = vsel %vm325, %v305, 0
        %v399 = vsel %vm325, %v306, 0
        %v402 = vsel %vm325, %v307, 0
        %v405 = vsel %vm325, %v308, 0
        %v408 = vsel %vm325, %v309, 0
        %v411 = vsel %vm325, %v310, 0
        %v414 = vsel %vm325, %v311, 0
        %v417 = vsel %vm325, %v312, 0
        %v420 = vsel %vm325, %v313, 0
        %422 = vmatprep.subr.mxu0 0.0
        %423 = vmatpush1.msra.mxu0 0.0
        %424 = vmatprep.subr.mxu0 0.0
        %425 = vmatpush1.msra.mxu0 0.0
        %426 = vmatprep.subr.mxu0 0.0
        %427 = vmatpush1.msra.mxu0 0.0
        %428 = vmatprep.subr.mxu0 0.0
        %429 = vmatpush1.msra.mxu0 0.0
        %430 = vmatprep.subr.mxu0 0.0
        %431 = vmatpush1.msra.mxu0 0.0
        %432 = vmatprep.subr.mxu0 0.0
        %433 = vmatpush1.msra.mxu0 0.0
        %434 = vmatprep.subr.mxu0 0.0
        %435 = vmatpush1.msra.mxu0 0.0
        %436 = vmatprep.subr.mxu0 0.0
        %437 = vmatpush1.msra.mxu0 0.0
        %438 = vmatprep.subr.mxu0 0.0
        %439 = vmatpush1.msra.mxu0 0.0
        %440 = vmatprep.subr.mxu0 0.0
        %441 = vmatpush1.msra.mxu0 0.0
        %442 = vmatprep.subr.mxu0 0.0
        %443 = vmatpush1.msra.mxu0 0.0
        %444 = vmatprep.subr.mxu0 0.0
        %445 = vmatpush1.msra.mxu0 0.0
        %446 = vmatprep.subr.mxu0 0.0
        %447 = vmatpush1.msra.mxu0 %v317
        %448 = vmatprep.subr.mxu0 0.0
        %449 = vmatpush1.msra.mxu0 %v316
        %450 = vmatprep.subr.mxu0 0.0
        %451 = vmatpush1.msra.mxu0 %v315
        %452 = vmatprep.subr.mxu0 0.0
        %453 = vmatpush1.msra.mxu0 %v314
        %454 = vmatprep.subr.mxu0 0.0
        %455 = vmatpush2.msra.mxu0 0.0
        %456 = vmatprep.subr.mxu0 0.0
        %457 = vmatpush2.msra.mxu0 0.0
        %458 = vmatprep.subr.mxu0 0.0
        %459 = vmatpush2.msra.mxu0 0.0
        %460 = vmatprep.subr.mxu0 0.0
        %461 = vmatpush2.msra.mxu0 0.0
        %462 = vmatprep.subr.mxu0 0.0
        %463 = vmatpush2.msra.mxu0 0.0
        %464 = vmatprep.subr.mxu0 0.0
        %465 = vmatpush2.msra.mxu0 0.0
        %466 = vmatprep.subr.mxu0 0.0
        %467 = vmatpush2.msra.mxu0 0.0
        %468 = vmatprep.subr.mxu0 0.0
        %469 = vmatpush2.msra.mxu0 0.0
        %470 = vmatprep.subr.mxu0 0.0
        %471 = vmatpush2.msra.mxu0 0.0
        %472 = vmatprep.subr.mxu0 0.0
        %473 = vmatpush2.msra.mxu0 0.0
        %474 = vmatprep.subr.mxu0 0.0
        %475 = vmatpush2.msra.mxu0 0.0
        %476 = vmatprep.subr.mxu0 0.0
        %477 = vmatpush2.msra.mxu0 0.0
        %478 = vmatprep.subr.mxu0 0.0
        %479 = vmatpush2.msra.mxu0 0.0
        %480 = vmatprep.subr.mxu0 0.0
        %481 = vmatpush2.msra.mxu0 0.0
        %482 = vmatprep.subr.mxu0 0.0
        %483 = vmatpush2.msra.mxu0 0.0
        %484 = vmatprep.subr.mxu0 0.0
        %485 = vmatpush2.msra.mxu0 0.0
        %486 = vmatprep.mubr.f32.mxu0 0.0
        %487 = vmatmul.mubr.f32.gmra.mxu0 %v327
        %v488 = vpop.f32.mrf.mxu0
        %v489 = vadd.f32 %v323, %v488
        %v490 = vpop.f32.mrf.mxu0
        %491 = vmatprep.mubr.f32.mxu0 0.0
        %492 = vmatmul.mubr.f32.gmra.mxu0 %v330
        %v493 = vpop.f32.mrf.mxu0
        %v494 = vadd.f32 %v323, %v493
        %v495 = vpop.f32.mrf.mxu0
        %496 = vmatprep.mubr.f32.mxu0 0.0
        %497 = vmatmul.mubr.f32.gmra.mxu0 %v333
        %v498 = vpop.f32.mrf.mxu0
        %v499 = vadd.f32 %v323, %v498
        %v500 = vpop.f32.mrf.mxu0
        %501 = vmatprep.mubr.f32.mxu0 0.0
        %502 = vmatmul.mubr.f32.gmra.mxu0 %v336
        %v503 = vpop.f32.mrf.mxu0
        %v504 = vadd.f32 %v323, %v503
        %v505 = vpop.f32.mrf.mxu0
        %506 = vmatprep.mubr.f32.mxu0 0.0
        %507 = vmatmul.mubr.f32.gmra.mxu0 %v339
        %v508 = vpop.f32.mrf.mxu0
        %v509 = vadd.f32 %v323, %v508
        %v510 = vpop.f32.mrf.mxu0
        %511 = vmatprep.mubr.f32.mxu0 0.0
        %512 = vmatmul.mubr.f32.gmra.mxu0 %v342
        %v513 = vpop.f32.mrf.mxu0
        %v514 = vadd.f32 %v323, %v513
        %v515 = vpop.f32.mrf.mxu0
        %516 = vmatprep.mubr.f32.mxu0 0.0
        %517 = vmatmul.mubr.f32.gmra.mxu0 %v345
        %v518 = vpop.f32.mrf.mxu0
        %v519 = vadd.f32 %v323, %v518
        %v520 = vpop.f32.mrf.mxu0
        %521 = vmatprep.mubr.f32.mxu0 0.0
        %522 = vmatmul.mubr.f32.gmra.mxu0 %v348
        %v523 = vpop.f32.mrf.mxu0
        %v524 = vadd.f32 %v323, %v523
        %v525 = vpop.f32.mrf.mxu0
        %526 = vmatprep.mubr.f32.mxu0 0.0
        %527 = vmatmul.mubr.f32.gmra.mxu0 %v351
        %v528 = vpop.f32.mrf.mxu0
        %v529 = vadd.f32 %v323, %v528
        %v530 = vpop.f32.mrf.mxu0
        %531 = vmatprep.mubr.f32.mxu0 0.0
        %532 = vmatmul.mubr.f32.gmra.mxu0 %v354
        %v533 = vpop.f32.mrf.mxu0
        %v534 = vadd.f32 %v323, %v533
        %v535 = vpop.f32.mrf.mxu0
        %536 = vmatprep.mubr.f32.mxu0 0.0
        %537 = vmatmul.mubr.f32.gmra.mxu0 %v357
        %v538 = vpop.f32.mrf.mxu0
        %v539 = vadd.f32 %v323, %v538
        %v540 = vpop.f32.mrf.mxu0
        %541 = vmatprep.mubr.f32.mxu0 0.0
        %542 = vmatmul.mubr.f32.gmra.mxu0 %v360
        %v543 = vpop.f32.mrf.mxu0
        %v544 = vadd.f32 %v323, %v543
        %v545 = vpop.f32.mrf.mxu0
        %546 = vmatprep.mubr.f32.mxu0 0.0
        %547 = vmatmul.mubr.f32.gmra.mxu0 %v363
        %v548 = vpop.f32.mrf.mxu0
        %v549 = vadd.f32 %v323, %v548
        %v550 = vpop.f32.mrf.mxu0
        %551 = vmatprep.mubr.f32.mxu0 0.0
        %552 = vmatmul.mubr.f32.gmra.mxu0 %v366
        %v553 = vpop.f32.mrf.mxu0
        %v554 = vadd.f32 %v323, %v553
        %v555 = vpop.f32.mrf.mxu0
        %556 = vmatprep.mubr.f32.mxu0 0.0
        %557 = vmatmul.mubr.f32.gmra.mxu0 %v369
        %v558 = vpop.f32.mrf.mxu0
        %v559 = vadd.f32 %v323, %v558
        %v560 = vpop.f32.mrf.mxu0
        %561 = vmatprep.mubr.f32.mxu0 0.0
        %562 = vmatmul.mubr.f32.gmra.mxu0 %v372
        %v563 = vpop.f32.mrf.mxu0
        %v564 = vadd.f32 %v323, %v563
        %v565 = vpop.f32.mrf.mxu0
        %566 = vmatprep.mubr.f32.mxu0 0.0
        %567 = vmatmul.mubr.f32.gmra.mxu0 %v375
        %v568 = vpop.f32.mrf.mxu0
        %v569 = vadd.f32 %v323, %v568
        %v570 = vpop.f32.mrf.mxu0
        %571 = vmatprep.mubr.f32.mxu0 0.0
        %572 = vmatmul.mubr.f32.gmra.mxu0 %v378
        %v573 = vpop.f32.mrf.mxu0
        %v574 = vadd.f32 %v323, %v573
        %v575 = vpop.f32.mrf.mxu0
        %576 = vmatprep.mubr.f32.mxu0 0.0
        %577 = vmatmul.mubr.f32.gmra.mxu0 %v381
        %v578 = vpop.f32.mrf.mxu0
        %v579 = vadd.f32 %v323, %v578
        %v580 = vpop.f32.mrf.mxu0
        %581 = vmatprep.mubr.f32.mxu0 0.0
        %582 = vmatmul.mubr.f32.gmra.mxu0 %v384
        %v583 = vpop.f32.mrf.mxu0
        %v584 = vadd.f32 %v323, %v583
        %v585 = vpop.f32.mrf.mxu0
        %586 = vmatprep.mubr.f32.mxu0 0.0
        %587 = vmatmul.mubr.f32.gmra.mxu0 %v387
        %v588 = vpop.f32.mrf.mxu0
        %v589 = vadd.f32 %v323, %v588
        %v590 = vpop.f32.mrf.mxu0
        %591 = vmatprep.mubr.f32.mxu0 0.0
        %592 = vmatmul.mubr.f32.gmra.mxu0 %v390
        %v593 = vpop.f32.mrf.mxu0
        %v594 = vadd.f32 %v323, %v593
        %v595 = vpop.f32.mrf.mxu0
        %596 = vmatprep.mubr.f32.mxu0 0.0
        %597 = vmatmul.mubr.f32.gmra.mxu0 %v393
        %v598 = vpop.f32.mrf.mxu0
        %v599 = vadd.f32 %v323, %v598
        %v600 = vpop.f32.mrf.mxu0
        %601 = vmatprep.mubr.f32.mxu0 0.0
        %602 = vmatmul.mubr.f32.gmra.mxu0 %v396
        %v603 = vpop.f32.mrf.mxu0
        %v604 = vadd.f32 %v323, %v603
        %v605 = vpop.f32.mrf.mxu0
        %606 = vmatprep.mubr.f32.mxu0 0.0
        %607 = vmatmul.mubr.f32.gmra.mxu0 %v399
        %v608 = vpop.f32.mrf.mxu0
        %v609 = vadd.f32 %v323, %v608
        %v610 = vpop.f32.mrf.mxu0
        %611 = vmatprep.mubr.f32.mxu0 0.0
        %612 = vmatmul.mubr.f32.gmra.mxu0 %v402
        %v613 = vpop.f32.mrf.mxu0
        %v614 = vadd.f32 %v323, %v613
        %v615 = vpop.f32.mrf.mxu0
        %616 = vmatprep.mubr.f32.mxu0 0.0
        %617 = vmatmul.mubr.f32.gmra.mxu0 %v405
        %v618 = vpop.f32.mrf.mxu0
        %v619 = vadd.f32 %v323, %v618
        %v620 = vpop.f32.mrf.mxu0
        %621 = vmatprep.mubr.f32.mxu0 0.0
        %622 = vmatmul.mubr.f32.gmra.mxu0 %v408
        %v623 = vpop.f32.mrf.mxu0
        %v624 = vadd.f32 %v323, %v623
        %v625 = vpop.f32.mrf.mxu0
        %626 = vmatprep.mubr.f32.mxu0 0.0
        %627 = vmatmul.mubr.f32.gmra.mxu0 %v411
        %v628 = vpop.f32.mrf.mxu0
        %v629 = vadd.f32 %v323, %v628
        %v630 = vpop.f32.mrf.mxu0
        %631 = vmatprep.mubr.f32.mxu0 0.0
        %632 = vmatmul.mubr.f32.gmra.mxu0 %v414
        %v633 = vpop.f32.mrf.mxu0
        %v634 = vadd.f32 %v323, %v633
        %v635 = vpop.f32.mrf.mxu0
        %636 = vmatprep.mubr.f32.mxu0 0.0
        %637 = vmatmul.mubr.f32.gmra.mxu0 %v417
        %v638 = vpop.f32.mrf.mxu0
        %v639 = vadd.f32 %v323, %v638
        %v640 = vpop.f32.mrf.mxu0
        %641 = vmatprep.mubr.f32.mxu0 0.0
        %642 = vmatmul.mubr.f32.gmra.mxu0 %v420
        %v643 = vpop.f32.mrf.mxu0
        %v644 = vadd.f32 %v323, %v643
        %v645 = vpop.f32.mrf.mxu0
        %646 = vdwg.mxu0
        %v647 = vld [vmem:[%s234] sm:$0xff]
        %v648 = vld [vmem:[%s234 + $0x8] sm:$0xff]
        %v649 = vld [vmem:[%s234 + $0x10] sm:$0xff]
        %v650 = vld [vmem:[%s234 + $0x18] sm:$0xff]
        %v651 = vld [vmem:[%s234 + $0x20] sm:$0xff]
        %v652 = vld [vmem:[%s234 + $0x28] sm:$0xff]
        %v653 = vld [vmem:[%s234 + $0x30] sm:$0xff]
        %v654 = vld [vmem:[%s234 + $0x38] sm:$0xff]
        %v655 = vld [vmem:[%s234 + $0x40] sm:$0xff]
        %v656 = vld [vmem:[%s234 + $0x48] sm:$0xff]
        %v657 = vld [vmem:[%s234 + $0x50] sm:$0xff]
        %v658 = vld [vmem:[%s234 + $0x58] sm:$0xff]
        %v659 = vld [vmem:[%s234 + $0x60] sm:$0xff]
        %v660 = vld [vmem:[%s234 + $0x68] sm:$0xff]
        %v661 = vld [vmem:[%s234 + $0x70] sm:$0xff]
        %v662 = vld [vmem:[%s234 + $0x78] sm:$0xff]
        %v663 = vld [vmem:[%s234 + $0x80] sm:$0xff]
        %v664 = vld [vmem:[%s234 + $0x88] sm:$0xff]
        %v665 = vld [vmem:[%s234 + $0x90] sm:$0xff]
        %v666 = vld [vmem:[%s234 + $0x98] sm:$0xff]
        %v667 = vld [vmem:[%s234 + $0xa0] sm:$0xff]
        %v668 = vld [vmem:[%s234 + $0xa8] sm:$0xff]
        %v669 = vld [vmem:[%s234 + $0xb0] sm:$0xff]
        %v670 = vld [vmem:[%s234 + $0xb8] sm:$0xff]
        %v671 = vld [vmem:[%s234 + $0xc0] sm:$0xff]
        %v672 = vld [vmem:[%s234 + $0xc8] sm:$0xff]
        %v673 = vld [vmem:[%s234 + $0xd0] sm:$0xff]
        %v674 = vld [vmem:[%s234 + $0xd8] sm:$0xff]
        %v675 = vld [vmem:[%s234 + $0xe0] sm:$0xff]
        %v676 = vld [vmem:[%s234 + $0xe8] sm:$0xff]
        %v677 = vld [vmem:[%s234 + $0xf0] sm:$0xff]
        %v678 = vld [vmem:[%s234 + $0xf8] sm:$0xff]
        %v679 = vsub.f32 %v489, %v647
        %v680 = vsub.f32 %v494, %v648
        %v681 = vsub.f32 %v499, %v649
        %v682 = vsub.f32 %v504, %v650
        %v683 = vsub.f32 %v509, %v651
        %v684 = vsub.f32 %v514, %v652
        %v685 = vsub.f32 %v519, %v653
        %v686 = vsub.f32 %v524, %v654
        %v687 = vsub.f32 %v529, %v655
        %v688 = vsub.f32 %v534, %v656
        %v689 = vsub.f32 %v539, %v657
        %v690 = vsub.f32 %v544, %v658
        %v691 = vsub.f32 %v549, %v659
        %v692 = vsub.f32 %v554, %v660
        %v693 = vsub.f32 %v559, %v661
        %v694 = vsub.f32 %v564, %v662
        %v695 = vsub.f32 %v569, %v663
        %v696 = vsub.f32 %v574, %v664
        %v697 = vsub.f32 %v579, %v665
        %v698 = vsub.f32 %v584, %v666
        %v699 = vsub.f32 %v589, %v667
        %v700 = vsub.f32 %v594, %v668
        %v701 = vsub.f32 %v599, %v669
        %v702 = vsub.f32 %v604, %v670
        %v703 = vsub.f32 %v609, %v671
        %v704 = vsub.f32 %v614, %v672
        %v705 = vsub.f32 %v619, %v673
        %v706 = vsub.f32 %v624, %v674
        %v707 = vsub.f32 %v629, %v675
        %v708 = vsub.f32 %v634, %v676
        %v709 = vsub.f32 %v639, %v677
        %v710 = vsub.f32 %v644, %v678
        %s711 = sadd.s32 %s22, %s23
        %s712 = smul.u32 %s711, 256
        %v713 = vlaneseq
        %v714 = vshrl.u32 %v713, 7
        %v715 = vadd.s32 %v714, 8
        %v716 = vadd.s32 %v714, 16
        %v717 = vadd.s32 %v714, 24
        %v718 = vadd.s32 %v714, 32
        %v719 = vadd.s32 %v714, 40
        %v720 = vadd.s32 %v714, 48
        %v721 = vadd.s32 %v714, 56
        %v722 = vadd.s32 %v714, 64
        %v723 = vadd.s32 %v714, 72
        %v724 = vadd.s32 %v714, 80
        %v725 = vadd.s32 %v714, 88
        %v726 = vadd.s32 %v714, 96
        %v727 = vadd.s32 %v714, 104
        %v728 = vadd.s32 %v714, 112
        %v729 = vadd.s32 %v714, 120
        %v730 = vadd.s32 %v714, 128
        %v731 = vadd.s32 %v714, 136
        %v732 = vadd.s32 %v714, 144
        %v733 = vadd.s32 %v714, 152
        %v734 = vadd.s32 %v714, 160
        %v735 = vadd.s32 %v714, 168
        %v736 = vadd.s32 %v714, 176
        %v737 = vadd.s32 %v714, 184
        %v738 = vadd.s32 %v714, 192
        %v739 = vadd.s32 %v714, 200
        %v740 = vadd.s32 %v714, 208
        %v741 = vadd.s32 %v714, 216
        %v742 = vadd.s32 %v714, 224
        %v743 = vadd.s32 %v714, 232
        %v744 = vadd.s32 %v714, 240
        %v745 = vadd.s32 %v714, 248
        %v746 = vstv %s712
        %v747 = vadd.s32 %v714, %v746
        %v748 = vadd.s32 %v715, %v746
        %v749 = vadd.s32 %v716, %v746
        %v750 = vadd.s32 %v717, %v746
        %v751 = vadd.s32 %v718, %v746
        %v752 = vadd.s32 %v719, %v746
        %v753 = vadd.s32 %v720, %v746
        %v754 = vadd.s32 %v721, %v746
        %v755 = vadd.s32 %v722, %v746
        %v756 = vadd.s32 %v723, %v746
        %v757 = vadd.s32 %v724, %v746
        %v758 = vadd.s32 %v725, %v746
        %v759 = vadd.s32 %v726, %v746
        %v760 = vadd.s32 %v727, %v746
        %v761 = vadd.s32 %v728, %v746
        %v762 = vadd.s32 %v729, %v746
        %v763 = vadd.s32 %v730, %v746
        %v764 = vadd.s32 %v731, %v746
        %v765 = vadd.s32 %v732, %v746
        %v766 = vadd.s32 %v733, %v746
        %v767 = vadd.s32 %v734, %v746
        %v768 = vadd.s32 %v735, %v746
        %v769 = vadd.s32 %v736, %v746
        %v770 = vadd.s32 %v737, %v746
        %v771 = vadd.s32 %v738, %v746
        %v772 = vadd.s32 %v739, %v746
        %v773 = vadd.s32 %v740, %v746
        %v774 = vadd.s32 %v741, %v746
        %v775 = vadd.s32 %v742, %v746
        %v776 = vadd.s32 %v743, %v746
        %v777 = vadd.s32 %v744, %v746
        %v778 = vadd.s32 %v745, %v746
        %vm779 = vcmp.lt.s32.totalorder %v747, 300
        %vm780 = vcmp.lt.s32.totalorder %v748, 300
        %vm781 = vcmp.lt.s32.totalorder %v749, 300
        %vm782 = vcmp.lt.s32.totalorder %v750, 300
        %vm783 = vcmp.lt.s32.totalorder %v751, 300
        %vm784 = vcmp.lt.s32.totalorder %v752, 300
        %vm785 = vcmp.lt.s32.totalorder %v753, 300
        %vm786 = vcmp.lt.s32.totalorder %v754, 300
        %vm787 = vcmp.lt.s32.totalorder %v755, 300
        %vm788 = vcmp.lt.s32.totalorder %v756, 300
        %vm789 = vcmp.lt.s32.totalorder %v757, 300
        %vm790 = vcmp.lt.s32.totalorder %v758, 300
        %vm791 = vcmp.lt.s32.totalorder %v759, 300
        %vm792 = vcmp.lt.s32.totalorder %v760, 300
        %vm793 = vcmp.lt.s32.totalorder %v761, 300
        %vm794 = vcmp.lt.s32.totalorder %v762, 300
        %vm795 = vcmp.lt.s32.totalorder %v763, 300
        %vm796 = vcmp.lt.s32.totalorder %v764, 300
        %vm797 = vcmp.lt.s32.totalorder %v765, 300
        %vm798 = vcmp.lt.s32.totalorder %v766, 300
        %vm799 = vcmp.lt.s32.totalorder %v767, 300
        %vm800 = vcmp.lt.s32.totalorder %v768, 300
        %vm801 = vcmp.lt.s32.totalorder %v769, 300
        %vm802 = vcmp.lt.s32.totalorder %v770, 300
        %vm803 = vcmp.lt.s32.totalorder %v771, 300
        %vm804 = vcmp.lt.s32.totalorder %v772, 300
        %vm805 = vcmp.lt.s32.totalorder %v773, 300
        %vm806 = vcmp.lt.s32.totalorder %v774, 300
        %vm807 = vcmp.lt.s32.totalorder %v775, 300
        %vm808 = vcmp.lt.s32.totalorder %v776, 300
        %vm809 = vcmp.lt.s32.totalorder %v777, 300
        %vm810 = vcmp.lt.s32.totalorder %v778, 300
        %v811 = vsel %vm779, %v679, 0.0
        %v812 = vsel %vm780, %v680, 0.0
        %v813 = vsel %vm781, %v681, 0.0
        %v814 = vsel %vm782, %v682, 0.0
        %v815 = vsel %vm783, %v683, 0.0
        %v816 = vsel %vm784, %v684, 0.0
        %v817 = vsel %vm785, %v685, 0.0
        %v818 = vsel %vm786, %v686, 0.0
        %v819 = vsel %vm787, %v687, 0.0
        %v820 = vsel %vm788, %v688, 0.0
        %v821 = vsel %vm789, %v689, 0.0
        %v822 = vsel %vm790, %v690, 0.0
        %v823 = vsel %vm791, %v691, 0.0
        %v824 = vsel %vm792, %v692, 0.0
        %v825 = vsel %vm793, %v693, 0.0
        %v826 = vsel %vm794, %v694, 0.0
        %v827 = vsel %vm795, %v695, 0.0
        %v828 = vsel %vm796, %v696, 0.0
        %v829 = vsel %vm797, %v697, 0.0
        %v830 = vsel %vm798, %v698, 0.0
        %v831 = vsel %vm799, %v699, 0.0
        %v832 = vsel %vm800, %v700, 0.0
        %v833 = vsel %vm801, %v701, 0.0
        %v834 = vsel %vm802, %v702, 0.0
        %v835 = vsel %vm803, %v703, 0.0
        %v836 = vsel %vm804, %v704, 0.0
        %v837 = vsel %vm805, %v705, 0.0
        %v838 = vsel %vm806, %v706, 0.0
        %v839 = vsel %vm807, %v707, 0.0
        %v840 = vsel %vm808, %v708, 0.0
        %v841 = vsel %vm809, %v709, 0.0
        %v842 = vsel %vm810, %v710, 0.0
        %v843 = vld [vmem:[#allocation2] sm:$0xff]
        %v844 = vld [vmem:[#allocation2 + $0x8] sm:$0xff]
        %v845 = vld [vmem:[#allocation2 + $0x10] sm:$0xff]
        %v846 = vld [vmem:[#allocation2 + $0x18] sm:$0xff]
        %v847 = vld [vmem:[#allocation2 + $0x20] sm:$0xff]
        %v848 = vld [vmem:[#allocation2 + $0x28] sm:$0xff]
        %v849 = vld [vmem:[#allocation2 + $0x30] sm:$0xff]
        %v850 = vld [vmem:[#allocation2 + $0x38] sm:$0xff]
        %v851 = vld [vmem:[#allocation2 + $0x40] sm:$0xff]
        %v852 = vld [vmem:[#allocation2 + $0x48] sm:$0xff]
        %v853 = vld [vmem:[#allocation2 + $0x50] sm:$0xff]
        %v854 = vld [vmem:[#allocation2 + $0x58] sm:$0xff]
        %v855 = vld [vmem:[#allocation2 + $0x60] sm:$0xff]
        %v856 = vld [vmem:[#allocation2 + $0x68] sm:$0xff]
        %v857 = vld [vmem:[#allocation2 + $0x70] sm:$0xff]
        %v858 = vld [vmem:[#allocation2 + $0x78] sm:$0xff]
        %v859 = vld [vmem:[#allocation2 + $0x80] sm:$0xff]
        %v860 = vld [vmem:[#allocation2 + $0x88] sm:$0xff]
        %v861 = vld [vmem:[#allocation2 + $0x90] sm:$0xff]
        %v862 = vld [vmem:[#allocation2 + $0x98] sm:$0xff]
        %v863 = vld [vmem:[#allocation2 + $0xa0] sm:$0xff]
        %v864 = vld [vmem:[#allocation2 + $0xa8] sm:$0xff]
        %v865 = vld [vmem:[#allocation2 + $0xb0] sm:$0xff]
        %v866 = vld [vmem:[#allocation2 + $0xb8] sm:$0xff]
        %v867 = vld [vmem:[#allocation2 + $0xc0] sm:$0xff]
        %v868 = vld [vmem:[#allocation2 + $0xc8] sm:$0xff]
        %v869 = vld [vmem:[#allocation2 + $0xd0] sm:$0xff]
        %v870 = vld [vmem:[#allocation2 + $0xd8] sm:$0xff]
        %v871 = vld [vmem:[#allocation2 + $0xe0] sm:$0xff]
        %v872 = vld [vmem:[#allocation2 + $0xe8] sm:$0xff]
        %v873 = vld [vmem:[#allocation2 + $0xf0] sm:$0xff]
        %v874 = vld [vmem:[#allocation2 + $0xf8] sm:$0xff]
        %v875 = vmul.f32 %v811, %v811
        %v876 = vmul.f32 %v812, %v812
        %v877 = vmul.f32 %v813, %v813
        %v878 = vmul.f32 %v814, %v814
        %v879 = vmul.f32 %v815, %v815
        %v880 = vmul.f32 %v816, %v816
        %v881 = vmul.f32 %v817, %v817
        %v882 = vmul.f32 %v818, %v818
        %v883 = vmul.f32 %v819, %v819
        %v884 = vmul.f32 %v820, %v820
        %v885 = vmul.f32 %v821, %v821
        %v886 = vmul.f32 %v822, %v822
        %v887 = vmul.f32 %v823, %v823
        %v888 = vmul.f32 %v824, %v824
        %v889 = vmul.f32 %v825, %v825
        %v890 = vmul.f32 %v826, %v826
        %v891 = vmul.f32 %v827, %v827
        %v892 = vmul.f32 %v828, %v828
        %v893 = vmul.f32 %v829, %v829
        %v894 = vmul.f32 %v830, %v830
        %v895 = vmul.f32 %v831, %v831
        %v896 = vmul.f32 %v832, %v832
        %v897 = vmul.f32 %v833, %v833
        %v898 = vmul.f32 %v834, %v834
        %v899 = vmul.f32 %v835, %v835
        %v900 = vmul.f32 %v836, %v836
        %v901 = vmul.f32 %v837, %v837
        %v902 = vmul.f32 %v838, %v838
        %v903 = vmul.f32 %v839, %v839
        %v904 = vmul.f32 %v840, %v840
        %v905 = vmul.f32 %v841, %v841
        %v906 = vmul.f32 %v842, %v842
        %v907 = vadd.f32 %v843, %v875
        %v908 = vadd.f32 %v844, %v876
        %v909 = vadd.f32 %v845, %v877
        %v910 = vadd.f32 %v846, %v878
        %v911 = vadd.f32 %v847, %v879
        %v912 = vadd.f32 %v848, %v880
        %v913 = vadd.f32 %v849, %v881
        %v914 = vadd.f32 %v850, %v882
        %v915 = vadd.f32 %v851, %v883
        %v916 = vadd.f32 %v852, %v884
        %v917 = vadd.f32 %v853, %v885
        %v918 = vadd.f32 %v854, %v886
        %v919 = vadd.f32 %v855, %v887
        %v920 = vadd.f32 %v856, %v888
        %v921 = vadd.f32 %v857, %v889
        %v922 = vadd.f32 %v858, %v890
        %v923 = vadd.f32 %v859, %v891
        %v924 = vadd.f32 %v860, %v892
        %v925 = vadd.f32 %v861, %v893
        %v926 = vadd.f32 %v862, %v894
        %v927 = vadd.f32 %v863, %v895
        %v928 = vadd.f32 %v864, %v896
        %v929 = vadd.f32 %v865, %v897
        %v930 = vadd.f32 %v866, %v898
        %v931 = vadd.f32 %v867, %v899
        %v932 = vadd.f32 %v868, %v900
        %v933 = vadd.f32 %v869, %v901
        %v934 = vadd.f32 %v870, %v902
        %v935 = vadd.f32 %v871, %v903
        %v936 = vadd.f32 %v872, %v904
        %v937 = vadd.f32 %v873, %v905
        %v938 = vadd.f32 %v874, %v906
        %vm939 = vcmask 392192
        %940 = vst.msk [vmem:[#allocation2] sm:$0xff] %vm939, %v907
        %941 = vst.msk [vmem:[#allocation2 + $0x8] sm:$0xff] %vm939, %v908
        %942 = vst.msk [vmem:[#allocation2 + $0x10] sm:$0xff] %vm939, %v909
        %943 = vst.msk [vmem:[#allocation2 + $0x18] sm:$0xff] %vm939, %v910
        %944 = vst.msk [vmem:[#allocation2 + $0x20] sm:$0xff] %vm939, %v911
        %945 = vst.msk [vmem:[#allocation2 + $0x28] sm:$0xff] %vm939, %v912
        %946 = vst.msk [vmem:[#allocation2 + $0x30] sm:$0xff] %vm939, %v913
        %947 = vst.msk [vmem:[#allocation2 + $0x38] sm:$0xff] %vm939, %v914
        %948 = vst.msk [vmem:[#allocation2 + $0x40] sm:$0xff] %vm939, %v915
        %949 = vst.msk [vmem:[#allocation2 + $0x48] sm:$0xff] %vm939, %v916
        %950 = vst.msk [vmem:[#allocation2 + $0x50] sm:$0xff] %vm939, %v917
        %951 = vst.msk [vmem:[#allocation2 + $0x58] sm:$0xff] %vm939, %v918
        %952 = vst.msk [vmem:[#allocation2 + $0x60] sm:$0xff] %vm939, %v919
        %953 = vst.msk [vmem:[#allocation2 + $0x68] sm:$0xff] %vm939, %v920
        %954 = vst.msk [vmem:[#allocation2 + $0x70] sm:$0xff] %vm939, %v921
        %955 = vst.msk [vmem:[#allocation2 + $0x78] sm:$0xff] %vm939, %v922
        %956 = vst.msk [vmem:[#allocation2 + $0x80] sm:$0xff] %vm939, %v923
        %957 = vst.msk [vmem:[#allocation2 + $0x88] sm:$0xff] %vm939, %v924
        %958 = vst.msk [vmem:[#allocation2 + $0x90] sm:$0xff] %vm939, %v925
        %959 = vst.msk [vmem:[#allocation2 + $0x98] sm:$0xff] %vm939, %v926
        %960 = vst.msk [vmem:[#allocation2 + $0xa0] sm:$0xff] %vm939, %v927
        %961 = vst.msk [vmem:[#allocation2 + $0xa8] sm:$0xff] %vm939, %v928
        %962 = vst.msk [vmem:[#allocation2 + $0xb0] sm:$0xff] %vm939, %v929
        %963 = vst.msk [vmem:[#allocation2 + $0xb8] sm:$0xff] %vm939, %v930
        %964 = vst.msk [vmem:[#allocation2 + $0xc0] sm:$0xff] %vm939, %v931
        %965 = vst.msk [vmem:[#allocation2 + $0xc8] sm:$0xff] %vm939, %v932
        %966 = vst.msk [vmem:[#allocation2 + $0xd0] sm:$0xff] %vm939, %v933
        %967 = vst.msk [vmem:[#allocation2 + $0xd8] sm:$0xff] %vm939, %v934
        %968 = vst.msk [vmem:[#allocation2 + $0xe0] sm:$0xff] %vm939, %v935
        %969 = vst.msk [vmem:[#allocation2 + $0xe8] sm:$0xff] %vm939, %v936
        %970 = vst.msk [vmem:[#allocation2 + $0xf0] sm:$0xff] %vm939, %v937
        %971 = vst.msk [vmem:[#allocation2 + $0xf8] sm:$0xff] %vm939, %v938
        // Predicated region
        $region41: #{tpu_custom_call.1} parent=35 // pred_check
          %p972 = pneg %p245
        $region42: #{tpu_custom_call.1} parent=35 // pred_check_branch
          %974 = sbr.rel (%p972) target = $region44
        $region43: #{tpu_custom_call.1} parent=35 // pred_region
          %v975 = vld [vmem:[#allocation2] sm:$0xff]
          %v976 = vld [vmem:[#allocation2 + $0x8] sm:$0xff]
          %v977 = vld [vmem:[#allocation2 + $0x10] sm:$0xff]
          %v978 = vld [vmem:[#allocation2 + $0x18] sm:$0xff]
          %v979 = vld [vmem:[#allocation2 + $0x20] sm:$0xff]
          %v980 = vld [vmem:[#allocation2 + $0x28] sm:$0xff]
          %v981 = vld [vmem:[#allocation2 + $0x30] sm:$0xff]
          %v982 = vld [vmem:[#allocation2 + $0x38] sm:$0xff]
          %v983 = vld [vmem:[#allocation2 + $0x40] sm:$0xff]
          %v984 = vld [vmem:[#allocation2 + $0x48] sm:$0xff]
          %v985 = vld [vmem:[#allocation2 + $0x50] sm:$0xff]
          %v986 = vld [vmem:[#allocation2 + $0x58] sm:$0xff]
          %v987 = vld [vmem:[#allocation2 + $0x60] sm:$0xff]
          %v988 = vld [vmem:[#allocation2 + $0x68] sm:$0xff]
          %v989 = vld [vmem:[#allocation2 + $0x70] sm:$0xff]
          %v990 = vld [vmem:[#allocation2 + $0x78] sm:$0xff]
          %v991 = vld [vmem:[#allocation2 + $0x80] sm:$0xff]
          %v992 = vld [vmem:[#allocation2 + $0x88] sm:$0xff]
          %v993 = vld [vmem:[#allocation2 + $0x90] sm:$0xff]
          %v994 = vld [vmem:[#allocation2 + $0x98] sm:$0xff]
          %v995 = vld [vmem:[#allocation2 + $0xa0] sm:$0xff]
          %v996 = vld [vmem:[#allocation2 + $0xa8] sm:$0xff]
          %v997 = vld [vmem:[#allocation2 + $0xb0] sm:$0xff]
          %v998 = vld [vmem:[#allocation2 + $0xb8] sm:$0xff]
          %v999 = vld [vmem:[#allocation2 + $0xc0] sm:$0xff]
          %v1000 = vld [vmem:[#allocation2 + $0xc8] sm:$0xff]
          %v1001 = vld [vmem:[#allocation2 + $0xd0] sm:$0xff]
          %v1002 = vld [vmem:[#allocation2 + $0xd8] sm:$0xff]
          %v1003 = vld [vmem:[#allocation2 + $0xe0] sm:$0xff]
          %v1004 = vld [vmem:[#allocation2 + $0xe8] sm:$0xff]
          %v1005 = vld [vmem:[#allocation2 + $0xf0] sm:$0xff]
          %v1006 = vld [vmem:[#allocation2 + $0xf8] sm:$0xff]
          %v1007 = vsel %vm939, %v975, 0.0
          %v1008 = vsel %vm939, %v976, 0.0
          %v1009 = vadd.f32 %v1007, %v1008
          %v1010 = vsel %vm939, %v977, 0.0
          %v1011 = vadd.f32 %v1009, %v1010
          %v1012 = vsel %vm939, %v978, 0.0
          %v1013 = vadd.f32 %v1011, %v1012
          %v1014 = vsel %vm939, %v979, 0.0
          %v1015 = vadd.f32 %v1013, %v1014
          %v1016 = vsel %vm939, %v980, 0.0
          %v1017 = vadd.f32 %v1015, %v1016
          %v1018 = vsel %vm939, %v981, 0.0
          %v1019 = vadd.f32 %v1017, %v1018
          %v1020 = vsel %vm939, %v982, 0.0
          %v1021 = vadd.f32 %v1019, %v1020
          %v1022 = vsel %vm939, %v983, 0.0
          %v1023 = vadd.f32 %v1021, %v1022
          %v1024 = vsel %vm939, %v984, 0.0
          %v1025 = vadd.f32 %v1023, %v1024
          %v1026 = vsel %vm939, %v985, 0.0
          %v1027 = vadd.f32 %v1025, %v1026
          %v1028 = vsel %vm939, %v986, 0.0
          %v1029 = vadd.f32 %v1027, %v1028
          %v1030 = vsel %vm939, %v987, 0.0
          %v1031 = vadd.f32 %v1029, %v1030
          %v1032 = vsel %vm939, %v988, 0.0
          %v1033 = vadd.f32 %v1031, %v1032
          %v1034 = vsel %vm939, %v989, 0.0
          %v1035 = vadd.f32 %v1033, %v1034
          %v1036 = vsel %vm939, %v990, 0.0
          %v1037 = vadd.f32 %v1035, %v1036
          %v1038 = vsel %vm939, %v991, 0.0
          %v1039 = vadd.f32 %v1037, %v1038
          %v1040 = vsel %vm939, %v992, 0.0
          %v1041 = vadd.f32 %v1039, %v1040
          %v1042 = vsel %vm939, %v993, 0.0
          %v1043 = vadd.f32 %v1041, %v1042
          %v1044 = vsel %vm939, %v994, 0.0
          %v1045 = vadd.f32 %v1043, %v1044
          %v1046 = vsel %vm939, %v995, 0.0
          %v1047 = vadd.f32 %v1045, %v1046
          %v1048 = vsel %vm939, %v996, 0.0
          %v1049 = vadd.f32 %v1047, %v1048
          %v1050 = vsel %vm939, %v997, 0.0
          %v1051 = vadd.f32 %v1049, %v1050
          %v1052 = vsel %vm939, %v998, 0.0
          %v1053 = vadd.f32 %v1051, %v1052
          %v1054 = vsel %vm939, %v999, 0.0
          %v1055 = vadd.f32 %v1053, %v1054
          %v1056 = vsel %vm939, %v1000, 0.0
          %v1057 = vadd.f32 %v1055, %v1056
          %v1058 = vsel %vm939, %v1001, 0.0
          %v1059 = vadd.f32 %v1057, %v1058
          %v1060 = vsel %vm939, %v1002, 0.0
          %v1061 = vadd.f32 %v1059, %v1060
          %v1062 = vsel %vm939, %v1003, 0.0
          %v1063 = vadd.f32 %v1061, %v1062
          %v1064 = vsel %vm939, %v1004, 0.0
          %v1065 = vadd.f32 %v1063, %v1064
          %v1066 = vsel %vm939, %v1005, 0.0
          %v1067 = vadd.f32 %v1065, %v1066
          %v1068 = vsel %vm939, %v1006, 0.0
          %v1069 = vadd.f32 %v1067, %v1068
          %1070 = vadd.xlane.f32.xlu0 %v1069
          %v1071 = vpop.xlane.xlu0 %1070
          %v1072 = vrot.slane %v1071, 4
          %v1073 = vadd.f32 %v1071, %v1072
          %v1074 = vrot.slane %v1073, 2
          %v1075 = vadd.f32 %v1073, %v1074
          %v1076 = vrot.slane %v1075, 1
          %v1077 = vadd.f32 %v1075, %v1076
          %s1078 = vtos %v1077
          %s1079 = smul.f32 %s1078, 6.9444446e-05
          %v1080 = vstv %s1079
          %1081 = vst [vmem:[%s228] sm:$0x1] %v1080
        $region44: #{tpu_custom_call.1} parent=35 // pred_fallthru
          _
        %s1082 = sand.u32 %s136, 1
        %s1083 = scalar_lea.sflag [#allocation4], %s1082
        %s1084 = sand.u32 %s136, 1
        %s1085 = scalar_lea.vmem [#allocation3], %s1084
        // Predicated region
        $region45: #{tpu_custom_call.1} parent=35 // pred_check
          %p1086 = pneg %p146
        $region46: #{tpu_custom_call.1} parent=35 // pred_check_branch
          %1088 = sbr.rel (%p1086) target = $region48
        $region47: #{tpu_custom_call.1} parent=35 // pred_region
          %s1090 = ssub.s32 16, 16
          %1091 = vsyncadd %s1083, %s1090
          %s1092 = smul.addr %s22, 16
          %s1093 = scalar_lea.hbm %s4, %s1092
          %s1095 = sshll.u32 %s1085, 4
          %s1096 = int_to_ptr.vmem [resolvable:$true] %s1095
          %1098 = dma.vmem_to_hbm [thread:$0]  %s1096, 16, %s1093, %s1083
        $region48: #{tpu_custom_call.1} parent=35 // pred_fallthru
          _
      $region36: #{tpu_custom_call.1} parent=5 // pred_fallthru
        _
      %p1099 = scmp.le.s32.totalorder 2, %s13
      // Predicated region
      $region49: #{tpu_custom_call.1} parent=5 // pred_check
        %p1100 = pneg %p1099
      $region50: #{tpu_custom_call.1} parent=5 // pred_check_branch
        %1102 = sbr.rel (%p1100) target = $region52
      $region51: #{tpu_custom_call.1} parent=5 // pred_region
        %s1103 = ssub.s32 %s13, 2
        // Predicated region
        $region53: #{tpu_custom_call.1} parent=51 // pred_check
          %p1104 = pneg %p152
        $region54: #{tpu_custom_call.1} parent=51 // pred_check_branch
          %1106 = sbr.rel (%p1104) target = $region56
        $region55: #{tpu_custom_call.1} parent=51 // pred_region
          %s1107 = sand.u32 %s137, 1
          %s1108 = scalar_lea.sflag [#allocation4], %s1107
          %s1109 = sand.u32 %s137, 1
          %s1110 = scalar_lea.vmem [#allocation3], %s1109
          %1111 = dma.done %s1108, 16
        $region56: #{tpu_custom_call.1} parent=51 // pred_fallthru
          _
      $region52: #{tpu_custom_call.1} parent=5 // pred_fallthru
        _
    $region6: #{tpu_custom_call.1} parent=1 // loop_footer
      %s17 = sadd.s32 1, %s13
    $region7: #{tpu_custom_call.1} parent=1 // loop_footer_branch
      %12 = sbr.rel target = $region3
    $region8: #{tpu_custom_call.1} parent=1 // loop_exit
      _
    %1112 = vsyncpa [#allocation4], 1
    %s1113 = scalar_lea.sflag [#allocation4], 1
    %1114 = vsyncpa %s1113, 1

</llo_original>
